<compile_context>
chip_gen: v7x
topology: tpu7x:2x2x1
jax: 0.10.0
libtpu: 0.0.40
codegen_flags: <defaults>
</compile_context>

<pallas_src>
import jax
import jax.numpy as jnp
from jax.experimental import pallas as pl
from jax.experimental.pallas import tpu as pltpu

QBIT = 8
QMIN = float(-(2 ** (QBIT - 1)))      # -128
QMAX = float(2 ** (QBIT - 1) - 1)     #  127


def _round_up(v, m):
    return ((v + m - 1) // m) * m


def _device_kind():
    try:
        return jax.devices()[0].device_kind.lower()
    except Exception:
        return ""


def _select_config():
    """Per-TPU-generation compute dtype and default (tm, tn, tk)."""
    kind = _device_kind()
    if ("v5" in kind) or ("v6" in kind):
        # v5/v6 MXUs support int8 natively; exact for integer codes in [-128,127].
        if "v5" in kind:
            return jnp.int8, (512, 512, 1024)      # v5e balance point is lower
        return jnp.int8, (1024, 1024, 1024)        # v6e
    # v7x (and unknown chips): bf16 MXU + f32 accumulation.  Do NOT use fp8 here.
    return jnp.bfloat16, (1024, 1024, 1024)


# ---------------------------------------------------------------------------
# Kernels
# ---------------------------------------------------------------------------

def _qlinear_kernel_f32acc(x_ref, w_ref, ss_ref, o_ref):
    # bf16 operands; accumulate directly into the VMEM-resident f32 output block.
    # x_ref: (tm, tk); w_ref: (tk, tn) pre-transposed; ss_ref: (2, tn) = [scale; b*scale]
    k = pl.program_id(2)

    @pl.when(k == 0)
    def _():
        o_ref[...] = jnp.zeros_like(o_ref)

    o_ref[...] += jnp.dot(x_ref[...], w_ref[...], preferred_element_type=jnp.float32)

    @pl.when(k == pl.num_programs(2) - 1)
    def _():
        # (acc + b) * s  ==  acc * s + (b * s)   (bias pre-folded into ss_ref[1])
        out = o_ref[...] * ss_ref[0:1, :] + ss_ref[1:2, :]
        o_ref[...] = jnp.clip(out, QMIN, QMAX)


def _qlinear_kernel_i32acc(x_ref, w_ref, ss_ref, o_ref, acc_ref):
    # int8 operands; int32 VMEM accumulator; float epilogue at the last K step.
    k = pl.program_id(2)

    @pl.when(k == 0)
    def _():
        acc_ref[...] = jnp.zeros_like(acc_ref)

    acc_ref[...] += jnp.dot(x_ref[...], w_ref[...], preferred_element_type=jnp.int32)

    @pl.when(k == pl.num_programs(2) - 1)
    def _():
        out = acc_ref[...].astype(jnp.float32) * ss_ref[0:1, :] + ss_ref[1:2, :]
        o_ref[...] = jnp.clip(out, QMIN, QMAX)


# ---------------------------------------------------------------------------
# One-time weight / scale preparation (hoisted out of the per-call path)
# ---------------------------------------------------------------------------

def prepare_qlinear(weight, bias, act_scale, wt_scale, output_scale,
                    *, compute_dtype=None, tm=None, tn=None, tk=None):
    """weight: (out_f, in_f) PyTorch layout; bias: (out_f,) or None.
    Returns a dict of padded/casted device arrays + static tiling, reused per call."""
    auto_dtype, (d_tm, d_tn, d_tk) = _select_config()
    compute_dtype = auto_dtype if compute_dtype is None else compute_dtype
    tm = d_tm if tm is None else tm
    tn = d_tn if tn is None else tn
    tk = d_tk if tk is None else tk

    N, K = weight.shape

    # Combined per-output-channel rescale, bias folded into it.
    scale = (jnp.asarray(act_scale, jnp.float32)
             * jnp.asarray(wt_scale, jnp.float32).reshape(-1)
             / jnp.asarray(output_scale, jnp.float32))                    # (N,)
    if bias is None:
        b_scaled = jnp.zeros((N,), jnp.float32)
    else:
        b_scaled = bias.astype(jnp.float32) * scale

    # Lane-dense tile sizes clipped to the (padded) problem.
    tn = min(tn, _round_up(N, 128))
    tk = min(tk, _round_up(K, 128))
    # Megacore: with a single M tile (small batch) parallelism must come from the
    # N axis -- make sure there are >= 2 N tiles whenever N spans >= 2 lanesful.
    if _round_up(N, 128) // 128 >= 2 and _round_up(N, tn) // tn < 2:
        tn = _round_up(_round_up(N, 128) // 2, 128)
    Np, Kp = _round_up(N, tn), _round_up(K, tk)

    # Pre-transpose once to (K, N) (standard contraction, no per-tile transposes in
    # the kernel), cast to MXU-native dtype and zero-pad.  K-padding contributes 0 to
    # the dot; N-padding columns have scale/bias 0 and are sliced off after the call.
    w_t = jnp.pad(weight.astype(compute_dtype).T, ((0, Kp - K), (0, Np - N)))
    ss = jnp.stack([jnp.pad(scale, (0, Np - N)),
                    jnp.pad(b_scaled, (0, Np - N))], axis=0)               # (2, Np)

    return dict(w=w_t, ss=ss, N=N, K=K, Np=Np, Kp=Kp,
                tm=tm, tn=tn, tk=tk, compute_dtype=compute_dtype)


# ---------------------------------------------------------------------------
# Per-call forward
# ---------------------------------------------------------------------------

def qlinear_apply(x, params):
    """out = clamp((x @ W^T + b) * act_scale * wt_scale / output_scale), float32."""
    B, K = x.shape
    assert K == params["K"], "weight/in_features mismatch"
    N, Np, Kp = params["N"], params["Np"], params["Kp"]
    tn, tk = params["tn"], params["tk"]
    cdt = params["compute_dtype"]

    # M tile: multiple of 32 covers f32/bf16/int8 sublane packing in one rule.
    tm = min(params["tm"], _round_up(B, 32))
    Mp = _round_up(B, tm)

    x_p = jnp.pad(x.astype(cdt), ((0, Mp - B), (0, Kp - K)))

    grid = (Mp // tm, Np // tn, Kp // tk)
    itemsize = jnp.dtype(cdt).itemsize

    if jnp.dtype(cdt) == jnp.int8:
        kernel = _qlinear_kernel_i32acc
        scratch = [pltpu.VMEM((tm, tn), jnp.int32)]
    else:
        kernel = _qlinear_kernel_f32acc
        scratch = []          # bf16 path accumulates directly into the f32 output tile

    out_p = pl.pallas_call(
        kernel,
        out_shape=jax.ShapeDtypeStruct((Mp, Np), jnp.float32),
        grid=grid,
        in_specs=[
            pl.BlockSpec((tm, tk), lambda i, j, k: (i, k)),   # activations
            pl.BlockSpec((tk, tn), lambda i, j, k: (k, j)),   # weight, (K, N) layout
            pl.BlockSpec((2, tn), lambda i, j, k: (0, j)),    # [scale; bias*scale]
        ],
        out_specs=pl.BlockSpec((tm, tn), lambda i, j, k: (i, j)),
        scratch_shapes=scratch,
        compiler_params=pltpu.CompilerParams(
            dimension_semantics=("parallel", "parallel", "arbitrary")),
        cost_estimate=pl.CostEstimate(
            flops=2 * Mp * Np * Kp,
            transcendentals=0,
            # Count re-streaming: x read once per N tile, w read once per M tile.
            bytes_accessed=(Mp * Kp * itemsize * (Np // tn)
                            + Kp * Np * itemsize * (Mp // tm)
                            + Mp * Np * 4 + 2 * Np * 4)),
    )(x_p, params["w"], params["ss"])

    return out_p[:B, :N]


def quantized_linear(x, weight, bias, act_scale, wt_scale, output_scale, **kwargs):
    """Convenience single-shot wrapper (prepares weights on every call)."""
    return qlinear_apply(
        x, prepare_qlinear(weight, bias, act_scale, wt_scale, output_scale, **kwargs))


if __name__ == "__main__":
    # Small shapes consistent with nn.Linear(in_features=32, out_features=64), batch=8.
    B, IN_F, OUT_F = 8, 32, 64

    key = jax.random.PRNGKey(0)
    k_x, k_w, k_b = jax.random.split(key, 3)

    # Synthetic "quantized" tensors: integer-valued codes stored as float32 (as they
    # would be after fake-quant / _quantize_weight / _quantize_bias), so both the
    # bf16 and int8 MXU paths are bit-exact vs the f32 reference.
    x = jnp.round(jax.random.uniform(k_x, (B, IN_F),
                                     minval=-128.0, maxval=127.0)).astype(jnp.float32)
    weight = jnp.round(jax.random.uniform(k_w, (OUT_F, IN_F),
                                          minval=-127.0, maxval=127.0)).astype(jnp.float32)
    bias = jnp.round(jax.random.uniform(k_b, (OUT_F,),
                                        minval=-512.0, maxval=512.0)).astype(jnp.float32)

    act_scale = jnp.float32(0.05)
    wt_scale = jnp.linspace(0.002, 0.01, OUT_F, dtype=jnp.float32)   # per-out-channel
    output_scale = jnp.float32(0.1)

    # One-time weight preparation (model load), then jit the per-call forward.
    params = prepare_qlinear(weight, bias, act_scale, wt_scale, output_scale)
    fn = jax.jit(lambda xs: qlinear_apply(xs, params))
    out = jax.block_until_ready(fn(x))

    # Reference in plain JAX (mirrors the PyTorch f32 forward).
    ref = jnp.dot(x, weight.T, preferred_element_type=jnp.float32) + bias
    ref = ref * act_scale * wt_scale.reshape(1, -1) / output_scale
    ref = jnp.clip(ref, QMIN, QMAX)

    assert out.shape == (B, OUT_F)
    assert jnp.allclose(out, ref, atol=5e-2, rtol=1e-5), "mismatch vs reference"

    print("KERNEL_OK")
</pallas_src>

<mosaic_0001>
module attributes {stable_mosaic.version = 11 : i64} {
  func.func @_qlinear_kernel_f32acc(%arg0: i32, %arg1: i32, %arg2: i32, %arg3: memref<32x128xbf16, #tpu.memory_space<vmem>>, %arg4: memref<128x128xbf16, #tpu.memory_space<vmem>>, %arg5: memref<2x128xf32, #tpu.memory_space<vmem>>, %arg6: memref<32x128xf32, #tpu.memory_space<vmem>>) attributes {dimension_semantics = [#tpu.dimension_semantics<parallel>, #tpu.dimension_semantics<parallel>, #tpu.dimension_semantics<arbitrary>], iteration_bounds = array<i64: 1, 1, 1>, scalar_prefetch = 0 : i64, scratch_operands = 0 : i64, tpu.core_type = #tpu.core_type<tc>, window_params = [{transform_indices = @transform_0, window_bounds = array<i64: 32, 128>}, {transform_indices = @transform_1, window_bounds = array<i64: 128, 128>}, {transform_indices = @transform_2, window_bounds = array<i64: 2, 128>}, {transform_indices = @transform_3, window_bounds = array<i64: 32, 128>}]} {
    %c0_i32 = arith.constant 0 : i32
    %0 = arith.cmpi eq, %arg2, %c0_i32 : i32
    %1 = arith.extui %0 : i1 to i32
    %c0_i32_0 = arith.constant 0 : i32
    %2 = arith.cmpi ne, %1, %c0_i32_0 : i32
    scf.if %2 {
      %cst_10 = arith.constant 0.000000e+00 : f32
      %12 = vector.broadcast %cst_10 : f32 to vector<32x128xf32>
      %c0_11 = arith.constant 0 : index
      %c0_12 = arith.constant 0 : index
      %13 = vector.load %arg6[%c0_11, %c0_12] : memref<32x128xf32, #tpu.memory_space<vmem>>, vector<32x128xf32>
      tpu.vector_store %arg6[%c0_11, %c0_12], %12 {strides = array<i32>} : memref<32x128xf32, #tpu.memory_space<vmem>>, vector<32x128xf32>,
    } else {
    }
    %c0 = arith.constant 0 : index
    %c0_1 = arith.constant 0 : index
    %3 = vector.load %arg6[%c0, %c0_1] : memref<32x128xf32, #tpu.memory_space<vmem>>, vector<32x128xf32>
    %c0_2 = arith.constant 0 : index
    %c0_3 = arith.constant 0 : index
    %4 = vector.load %arg3[%c0_2, %c0_3] : memref<32x128xbf16, #tpu.memory_space<vmem>>, vector<32x128xbf16>
    %c0_4 = arith.constant 0 : index
    %c0_5 = arith.constant 0 : index
    %5 = vector.load %arg4[%c0_4, %c0_5] : memref<128x128xbf16, #tpu.memory_space<vmem>>, vector<128x128xbf16>
    %cst = arith.constant dense<0.000000e+00> : vector<32x128xf32>
    %6 = tpu.matmul %4, %5, %cst {dimension_numbers = #tpu.dot_dimension_numbers<[1], [0], [0], [1], [0, 0, 1, 1], [], []>} : vector<32x128xbf16>, vector<128x128xbf16>, vector<32x128xf32> -> vector<32x128xf32>
    %7 = arith.addf %3, %6 : vector<32x128xf32>
    %c0_6 = arith.constant 0 : index
    %c0_7 = arith.constant 0 : index
    %8 = vector.load %arg6[%c0_6, %c0_7] : memref<32x128xf32, #tpu.memory_space<vmem>>, vector<32x128xf32>
    tpu.vector_store %arg6[%c0_6, %c0_7], %7 {strides = array<i32>} : memref<32x128xf32, #tpu.memory_space<vmem>>, vector<32x128xf32>,
    %c0_i32_8 = arith.constant 0 : i32
    %9 = arith.cmpi eq, %arg2, %c0_i32_8 : i32
    %10 = arith.extui %9 : i1 to i32
    %c0_i32_9 = arith.constant 0 : i32
    %11 = arith.cmpi ne, %10, %c0_i32_9 : i32
    scf.if %11 {
      %c0_10 = arith.constant 0 : index
      %c0_11 = arith.constant 0 : index
      %12 = vector.load %arg6[%c0_10, %c0_11] : memref<32x128xf32, #tpu.memory_space<vmem>>, vector<32x128xf32>
      %c0_12 = arith.constant 0 : index
      %c0_13 = arith.constant 0 : index
      %13 = vector.load %arg5[%c0_12, %c0_13] : memref<2x128xf32, #tpu.memory_space<vmem>>, vector<1x128xf32>
      %14 = vector.broadcast %13 : vector<1x128xf32> to vector<32x128xf32>
      %15 = arith.mulf %12, %14 : vector<32x128xf32>
      %c1 = arith.constant 1 : index
      %c0_14 = arith.constant 0 : index
      %16 = vector.load %arg5[%c1, %c0_14] : memref<2x128xf32, #tpu.memory_space<vmem>>, vector<1x128xf32>
      %17 = vector.broadcast %16 : vector<1x128xf32> to vector<32x128xf32>
      %18 = arith.addf %15, %17 : vector<32x128xf32>
      %cst_15 = arith.constant -1.280000e+02 : f32
      %cst_16 = arith.constant 1.270000e+02 : f32
      %19 = vector.broadcast %cst_15 : f32 to vector<32x128xf32>
      %20 = arith.maximumf %19, %18 : vector<32x128xf32>
      %21 = vector.broadcast %cst_16 : f32 to vector<32x128xf32>
      %22 = arith.minimumf %21, %20 : vector<32x128xf32>
      %c0_17 = arith.constant 0 : index
      %c0_18 = arith.constant 0 : index
      %23 = vector.load %arg6[%c0_17, %c0_18] : memref<32x128xf32, #tpu.memory_space<vmem>>, vector<32x128xf32>
      tpu.vector_store %arg6[%c0_17, %c0_18], %22 {strides = array<i32>} : memref<32x128xf32, #tpu.memory_space<vmem>>, vector<32x128xf32>,
    } else {
    }
    return
  }
  func.func @transform_0(%arg0: i32, %arg1: i32, %arg2: i32) -> (i32, i32) {
    %c0_i32 = arith.constant 0 : i32
    return %arg0, %arg2 : i32, i32
  }
  func.func @transform_1(%arg0: i32, %arg1: i32, %arg2: i32) -> (i32, i32) {
    %c0_i32 = arith.constant 0 : i32
    return %arg2, %arg1 : i32, i32
  }
  func.func @transform_2(%arg0: i32, %arg1: i32, %arg2: i32) -> (i32, i32) {
    %c0_i32 = arith.constant 0 : i32
    %c0_i32_0 = arith.constant 0 : i32
    return %c0_i32, %arg1 : i32, i32
  }
  func.func @transform_3(%arg0: i32, %arg1: i32, %arg2: i32) -> (i32, i32) {
    %c0_i32 = arith.constant 0 : i32
    return %arg0, %arg1 : i32, i32
  }
}

</mosaic_0001>

<llo_original>
// kernel: _lambda_.1
$region0: #{_lambda_.1}
  #allocation0 [shape = 'u32[]', space=smem, size = 0x4, offset = 0x4, fixed_abs, tag = 'smem constant byte address 0x4 - core index']
  #allocation1 [shape = 'u32[144,128]{1,0:T(1,128)}', space=vmem, size = 0x12000, scoped, tag = 'internal scratch']
  %s0 = inlined_call_operand.vmem [shape: bf16[32,128], index: 0, kind: input, shape index: {}]
  %s1 = inlined_call_operand.hbm [shape: bf16[128,128], index: 1, kind: input, shape index: {}]
  %s2 = inlined_call_operand.vmem [shape: f32[2,128], index: 2, kind: input, shape index: {}]
  %s3 = inlined_call_operand.vmem [shape: f32[32,128], index: 3, kind: output, shape index: {}]
  %s4 = sld [smem:[#allocation0]]
  $region34: #{_lambda_.1} parent=0
    _
  %s6 = ssub.s32 1, %s4
  %s7 = scalar_select 0, %s6, %s4
  $region1: #{_lambda_.1} parent=0
    #allocation2 [shape = 'u8[32768]{0}', space=vmem, size = 0x8000, scoped, tag = 'input window, operand 1, single buffered']
    #allocation3 [shape = 's32[1]{0}', space=sflag, size = 0x4, scoped, tag = 'scoped memory for _lambda_.1']
    %8 = vsyncpa [#allocation3], 0
    // Predicated region
    $region2: #{_lambda_.1} parent=1 // pred_check
      _
    $region3: #{_lambda_.1} parent=1 // pred_check_branch
      %10 = sbr.rel (0) target = $region5
    $region4: #{_lambda_.1} parent=1 // pred_region
      _
    $region5: #{_lambda_.1} parent=1 // pred_fallthru
      _
    // Predicated region
    $region6: #{_lambda_.1} parent=1 // pred_check
      _
    $region7: #{_lambda_.1} parent=1 // pred_check_branch
      %12 = sbr.rel (0) target = $region9
    $region8: #{_lambda_.1} parent=1 // pred_region
      %s14 = ssub.s32 1024, 1024
      %15 = vsyncadd [#allocation3], %s14
      %s16 = sshll.u32 [#allocation2], 4
      %s17 = int_to_ptr.vmem [resolvable:$true] %s16
      %22 = dma.hbm_to_vmem [thread:$0]  %s1, 1024, %s17, [#allocation3], 64, 64, 4
    $region9: #{_lambda_.1} parent=1 // pred_fallthru
      _
    // Predicated region
    $region10: #{_lambda_.1} parent=1 // pred_check
      _
    $region11: #{_lambda_.1} parent=1 // pred_check_branch
      %24 = sbr.rel (0) target = $region13
    $region12: #{_lambda_.1} parent=1 // pred_region
      _
    $region13: #{_lambda_.1} parent=1 // pred_fallthru
      _
    // Predicated region
    $region14: #{_lambda_.1} parent=1 // pred_check
      _
    $region15: #{_lambda_.1} parent=1 // pred_check_branch
      %26 = sbr.rel (0) target = $region17
    $region16: #{_lambda_.1} parent=1 // pred_region
      %27 = dma.done [#allocation3], 1024
    $region17: #{_lambda_.1} parent=1 // pred_fallthru
      _
    %p29 = scmp.eq.s32.totalorder 0, 0
    // Predicated region
    $region18: #{_lambda_.1} parent=1 // pred_check
      %p30 = pneg %p29
    $region19: #{_lambda_.1} parent=1 // pred_check_branch
      %32 = sbr.rel (%p30) target = $region21
    $region20: #{_lambda_.1} parent=1 // pred_region
      %33 = vst [vmem:[%s3] sm:$0xff] 0.0
      %34 = vst [vmem:[%s3 + $0x8] sm:$0xff] 0.0
      %35 = vst [vmem:[%s3 + $0x10] sm:$0xff] 0.0
      %36 = vst [vmem:[%s3 + $0x18] sm:$0xff] 0.0
    $region21: #{_lambda_.1} parent=1 // pred_fallthru
      _
    %v37 = vld [vmem:[%s3] sm:$0xff]
    %v38 = vld [vmem:[%s3 + $0x8] sm:$0xff]
    %v39 = vld [vmem:[%s3 + $0x10] sm:$0xff]
    %v40 = vld [vmem:[%s3 + $0x18] sm:$0xff]
    %v41 = vld [vmem:[%s0] sm:$0xf]
    %v42 = vld [vmem:[%s0 + $0x4] sm:$0xf]
    %v43 = vld [vmem:[%s0 + $0x8] sm:$0xf]
    %v44 = vld [vmem:[%s0 + $0xc] sm:$0xf]
    %v45 = vld [vmem:[#allocation2] sm:$0xf]
    %v46 = vld [vmem:[#allocation2 + $0x4] sm:$0xf]
    %v47 = vld [vmem:[#allocation2 + $0x8] sm:$0xf]
    %v48 = vld [vmem:[#allocation2 + $0xc] sm:$0xf]
    %v49 = vld [vmem:[#allocation2 + $0x10] sm:$0xf]
    %v50 = vld [vmem:[#allocation2 + $0x14] sm:$0xf]
    %v51 = vld [vmem:[#allocation2 + $0x18] sm:$0xf]
    %v52 = vld [vmem:[#allocation2 + $0x1c] sm:$0xf]
    %v53 = vld [vmem:[#allocation2 + $0x20] sm:$0xf]
    %v54 = vld [vmem:[#allocation2 + $0x24] sm:$0xf]
    %v55 = vld [vmem:[#allocation2 + $0x28] sm:$0xf]
    %v56 = vld [vmem:[#allocation2 + $0x2c] sm:$0xf]
    %v57 = vld [vmem:[#allocation2 + $0x30] sm:$0xf]
    %v58 = vld [vmem:[#allocation2 + $0x34] sm:$0xf]
    %v59 = vld [vmem:[#allocation2 + $0x38] sm:$0xf]
    %v60 = vld [vmem:[#allocation2 + $0x3c] sm:$0xf]
    %v65 = vunpack.c.l.b16 %v41
    %v66 = vunpack.c.l.b16 %v42
    %v67 = vunpack.c.l.b16 %v43
    %v68 = vunpack.c.l.b16 %v44
    %v69 = vpack.c.b16 %v66, %v65
    %v70 = vpack.c.b16 %v68, %v67
    %v89 = vunpack.c.l.b16 %v45
    %v90 = vunpack.c.l.b16 %v46
    %v91 = vunpack.c.l.b16 %v47
    %v92 = vunpack.c.l.b16 %v48
    %v93 = vunpack.c.l.b16 %v49
    %v94 = vunpack.c.l.b16 %v50
    %v95 = vunpack.c.l.b16 %v51
    %v96 = vunpack.c.l.b16 %v52
    %v97 = vunpack.c.l.b16 %v53
    %v98 = vunpack.c.l.b16 %v54
    %v99 = vunpack.c.l.b16 %v55
    %v100 = vunpack.c.l.b16 %v56
    %v101 = vunpack.c.l.b16 %v57
    %v102 = vunpack.c.l.b16 %v58
    %v103 = vunpack.c.l.b16 %v59
    %v104 = vunpack.c.l.b16 %v60
    %v105 = vpack.c.b16 %v90, %v89
    %v106 = vpack.c.b16 %v92, %v91
    %v107 = vpack.c.b16 %v94, %v93
    %v108 = vpack.c.b16 %v96, %v95
    %v109 = vpack.c.b16 %v98, %v97
    %v110 = vpack.c.b16 %v100, %v99
    %v111 = vpack.c.b16 %v102, %v101
    %v112 = vpack.c.b16 %v104, %v103
    %121 = vmatprep.subr.bf16.mxu0 0
    %122 = vmatpush1.bf16.msra.mxu0 %v105
    %123 = vmatprep.subr.bf16.mxu0 0
    %124 = vmatpush1.bf16.msra.mxu0 %v106
    %125 = vmatprep.subr.bf16.mxu0 0
    %126 = vmatpush1.bf16.msra.mxu0 %v107
    %127 = vmatprep.subr.bf16.mxu0 0
    %128 = vmatpush1.bf16.msra.mxu0 %v108
    %129 = vmatprep.subr.bf16.mxu0 0
    %130 = vmatpush1.bf16.msra.mxu0 %v109
    %131 = vmatprep.subr.bf16.mxu0 0
    %132 = vmatpush1.bf16.msra.mxu0 %v110
    %133 = vmatprep.subr.bf16.mxu0 0
    %134 = vmatpush1.bf16.msra.mxu0 %v111
    %135 = vmatprep.subr.bf16.mxu0 0
    %136 = vmatpush1.bf16.msra.mxu0 %v112
    %137 = vmatprep.subr.bf16.mxu0 0
    %138 = vmatpush1.bf16.msra.mxu0 0
    %139 = vmatprep.subr.bf16.mxu0 0
    %140 = vmatpush1.bf16.msra.mxu0 0
    %141 = vmatprep.subr.bf16.mxu0 0
    %142 = vmatpush1.bf16.msra.mxu0 0
    %143 = vmatprep.subr.bf16.mxu0 0
    %144 = vmatpush1.bf16.msra.mxu0 0
    %145 = vmatprep.subr.bf16.mxu0 0
    %146 = vmatpush1.bf16.msra.mxu0 0
    %147 = vmatprep.subr.bf16.mxu0 0
    %148 = vmatpush1.bf16.msra.mxu0 0
    %149 = vmatprep.subr.bf16.mxu0 0
    %150 = vmatpush1.bf16.msra.mxu0 0
    %151 = vmatprep.subr.bf16.mxu0 0
    %152 = vmatpush1.bf16.msra.mxu0 0
    %153 = vmatprep.mubr.bf16.mxu0 0
    %154 = vmatmul.mubr.bf16.gmra.mrb[0].mxu0 %v69
    %v155 = vpop.f32.mrb[0].mxu0
    %v156 = vadd.f32 0.0, %v155
    %v157 = vpop.f32.mrb[0].mxu0
    %v158 = vpop.f32.mrb[0].mxu0
    %v159 = vadd.f32 0.0, %v158
    %v160 = vpop.f32.mrb[0].mxu0
    %161 = vmatprep.mubr.bf16.mxu0 0
    %162 = vmatmul.mubr.bf16.gmra.mrb[0].mxu0 %v70
    %v163 = vpop.f32.mrb[0].mxu0
    %v164 = vadd.f32 0.0, %v163
    %v165 = vpop.f32.mrb[0].mxu0
    %v166 = vpop.f32.mrb[0].mxu0
    %v167 = vadd.f32 0.0, %v166
    %v168 = vpop.f32.mrb[0].mxu0
    %169 = vdwg.mxu0
    %v170 = vadd.f32 %v37, %v156
    %v171 = vadd.f32 %v38, %v159
    %v172 = vadd.f32 %v39, %v164
    %v173 = vadd.f32 %v40, %v167
    %174 = vst [vmem:[%s3] sm:$0xff] %v170
    %175 = vst [vmem:[%s3 + $0x8] sm:$0xff] %v171
    %176 = vst [vmem:[%s3 + $0x10] sm:$0xff] %v172
    %177 = vst [vmem:[%s3 + $0x18] sm:$0xff] %v173
    // Predicated region
    $region22: #{_lambda_.1} parent=1 // pred_check
      %p178 = pneg %p29
    $region23: #{_lambda_.1} parent=1 // pred_check_branch
      %180 = sbr.rel (%p178) target = $region25
    $region24: #{_lambda_.1} parent=1 // pred_region
      %v181 = vld [vmem:[%s3] sm:$0xff]
      %v182 = vld [vmem:[%s3 + $0x8] sm:$0xff]
      %v183 = vld [vmem:[%s3 + $0x10] sm:$0xff]
      %v184 = vld [vmem:[%s3 + $0x18] sm:$0xff]
      %v185 = vld [vmem:[%s2] sm:$0x1]
      %v186 = vlaneseq
      %v187 = vshrl.u32 %v186, 7
      %v188 = vsub.s32 0, %v187
      %v189 = vrot.slane %v185, %v188
      %v190 = vmul.f32 %v181, %v189
      %v191 = vmul.f32 %v182, %v189
      %v192 = vmul.f32 %v183, %v189
      %v193 = vmul.f32 %v184, %v189
      %v194 = vld [vmem:[%s2 + $0x1] sm:$0x1]
      %v195 = vlaneseq
      %v196 = vshrl.u32 %v195, 7
      %v197 = vsub.s32 0, %v196
      %v198 = vrot.slane %v194, %v197
      %v199 = vadd.f32 %v190, %v198
      %v200 = vadd.f32 %v191, %v198
      %v201 = vadd.f32 %v192, %v198
      %v202 = vadd.f32 %v193, %v198
      %v203 = vmax.f32 %v199, -128.0
      %v204 = vmax.f32 %v200, -128.0
      %v205 = vmax.f32 %v201, -128.0
      %v206 = vmax.f32 %v202, -128.0
      %v207 = vmin.f32 %v203, 127.0
      %v208 = vmin.f32 %v204, 127.0
      %v209 = vmin.f32 %v205, 127.0
      %v210 = vmin.f32 %v206, 127.0
      %211 = vst [vmem:[%s3] sm:$0xff] %v207
      %212 = vst [vmem:[%s3 + $0x8] sm:$0xff] %v208
      %213 = vst [vmem:[%s3 + $0x10] sm:$0xff] %v209
      %214 = vst [vmem:[%s3 + $0x18] sm:$0xff] %v210
    $region25: #{_lambda_.1} parent=1 // pred_fallthru
      _
    // Predicated region
    $region26: #{_lambda_.1} parent=1 // pred_check
      _
    $region27: #{_lambda_.1} parent=1 // pred_check_branch
      %216 = sbr.rel (0) target = $region29
    $region28: #{_lambda_.1} parent=1 // pred_region
      _
    $region29: #{_lambda_.1} parent=1 // pred_fallthru
      _
    // Predicated region
    $region30: #{_lambda_.1} parent=1 // pred_check
      _
    $region31: #{_lambda_.1} parent=1 // pred_check_branch
      %218 = sbr.rel (0) target = $region33
    $region32: #{_lambda_.1} parent=1 // pred_region
      _
    $region33: #{_lambda_.1} parent=1 // pred_fallthru
      _
    %219 = vsyncpa [#allocation3], 1

</llo_original>
